<compile_context>
chip_gen: v5e
topology: v5e:2x2
jax: 0.10.0
libtpu: 0.0.40
codegen_flags: <defaults>
</compile_context>

<pallas_src>
import functools

import numpy as np
import jax
import jax.numpy as jnp
from jax.experimental import pallas as pl
from jax.experimental.pallas import tpu as pltpu


# ----------------------------------------------------------------------------
# Deterministic "parameter" setup (matches gaussian_kernel_1d in PyTorch spec)
# ----------------------------------------------------------------------------
def gaussian_kernel_1d(window_size: int, sigma: float) -> np.ndarray:
    radius = window_size // 2
    x = np.arange(-radius, radius + 1, dtype=np.float64)
    phi = np.exp(-0.5 / (sigma ** 2) * x ** 2)
    phi = phi / phi.sum()
    return phi.astype(np.float32)


def _banded_conv_matrix(size: int, k1d: np.ndarray) -> np.ndarray:
    """M[o, i] = k1d[i - o + r] for |i - o| <= r else 0.

    M @ v == zero-padded 'same' 1-D convolution of v with k1d (exactly what
    F.conv2d(..., padding=r) does along one spatial axis).
    """
    radius = len(k1d) // 2
    m = np.zeros((size, size), dtype=np.float32)
    for o in range(size):
        lo = max(0, o - radius)
        hi = min(size, o + radius + 1)
        m[o, lo:hi] = k1d[lo - o + radius: hi - o + radius]
    return m


# ----------------------------------------------------------------------------
# Block-size / VMEM heuristics
# ----------------------------------------------------------------------------
_BLOCK_VMEM_BUDGET = 24 * 1024 * 1024   # per-step working-set budget (v7x-safe)


def _block_vmem_bytes(per: int, height: int, width: int, in_itemsize: int) -> int:
    """Generous upper bound on the VMEM working set of one grid step."""
    e = per * height * width
    total = 2 * 2 * e * in_itemsize            # x, y input blocks (double-buffered)
    total += 5 * e * 2                         # stacked bf16 fields
    total += 5 * e * (4 + 2)                   # W-pass output (f32) + bf16 recast
    total += 5 * e * 4                         # H-pass output (f32)
    total += 5 * per * height * height * 2     # broadcast M_H (bf16)
    total += 10 * e * 4                        # elementwise temporaries (generous)
    total += 2 * 2 * (width * width + height * height) * 2   # conv matrices
    total += 2 * 4 * width                     # output block
    return total


def _pick_images_per_block(nc: int, height: int, width: int, in_itemsize: int,
                           target_rows: int = 512) -> int:
    """Images per grid block: ~512 rows to amortize per-step overhead, but
    grid >= 2 (v7x megacore + pipeline overlap) and working set <= budget."""
    per = max(1, min(nc, max(1, target_rows // max(height, 1))))
    if nc >= 2:
        per = max(1, min(per, (nc + 1) // 2))        # guarantees grid >= 2
    while per > 1 and _block_vmem_bytes(per, height, width, in_itemsize) > _BLOCK_VMEM_BUDGET:
        per -= 1
    return per


# ----------------------------------------------------------------------------
# Pallas kernel: one block of whole images -> lane-dense partial sums
# ----------------------------------------------------------------------------
def _ssim_block_kernel(x_ref, y_ref, mwt_ref, mh_ref, out_ref, *,
                       nc_total, needs_mask, c1, c2):
    per, height, width = x_ref.shape

    x = x_ref[...].astype(jnp.float32)
    y = y_ref[...].astype(jnp.float32)

    if needs_mask:
        # Remainder block: images beyond N*C hold unspecified data.  All
        # matmuls below keep images separated (distinct M rows / batch
        # elements), so garbage never mixes into valid images; we just zero
        # the phantom SSIM values (which would otherwise evaluate to 1)
        # before the partial sum.
        img0 = pl.program_id(0) * per
        img = img0 + jax.lax.broadcasted_iota(jnp.int32, (per, height, width), 0)
        valid = img < nc_total
        x = jnp.where(valid, x, 0.0)
        y = jnp.where(valid, y, 0.0)

    # Five fields to blur, computed in f32, cast to bf16 for the MXU and
    # stacked along the image axis: the W-pass becomes ONE matmul with
    # M = 5*per*H (single weight push, 5x larger M).
    f32_fields = (x, y, x * x, y * y, x * y)
    fields = jnp.concatenate(
        [f.astype(jnp.bfloat16).reshape(per * height, width) for f in f32_fields],
        axis=0)                                            # (5*per*H, W) bf16

    # --- W-pass (lane axis): zero-padded 'same' conv as a banded matmul.
    #     bf16 operands, f32 accumulation.
    t = jnp.dot(fields, mwt_ref[...],
                preferred_element_type=jnp.float32)        # (5*per*H, W) f32

    # --- H-pass (sublane axis): per-image banded matmul, batched over the
    #     5*per (field, image) pairs.  Only H MACs per output element — no
    #     kron(I, M_H) waste, and the band matrix is just (H, H).
    t3 = t.reshape(5 * per, height, width).astype(jnp.bfloat16)
    mh_b = jnp.broadcast_to(mh_ref[...], (5 * per, height, height))
    u = jax.lax.dot_general(
        mh_b, t3,
        dimension_numbers=(((2,), (1,)), ((0,), (0,))),
        preferred_element_type=jnp.float32)                # (5*per, H, W) f32

    mu_x = u[0 * per:1 * per]
    mu_y = u[1 * per:2 * per]
    e_x2 = u[2 * per:3 * per]
    e_y2 = u[3 * per:4 * per]
    e_xy = u[4 * per:5 * per]

    mu_x2 = mu_x * mu_x
    mu_y2 = mu_y * mu_y
    mu_xy = mu_x * mu_y
    var_x = e_x2 - mu_x2
    var_y = e_y2 - mu_y2
    cov_xy = e_xy - mu_xy

    num = (2.0 * mu_xy + c1) * (2.0 * cov_xy + c2)
    den = (mu_x2 + mu_y2 + c1) * (var_x + var_y + c2)
    inv = pl.reciprocal(den, approx=True)      # EUP slot
    inv = inv * (2.0 - den * inv)              # one Newton step -> ~f32 exact
    ssim = num * inv

    if needs_mask:
        ssim = jnp.where(valid, ssim, 0.0)

    # Staged reduction: reduce over images (leading) and rows (sublanes);
    # store a lane-dense (1, 1, W) partial sum.  The tiny cross-lane /
    # cross-block reduce happens outside the kernel.
    out_ref[...] = jnp.sum(ssim, axis=(0, 1)).reshape(1, 1, width)


# ----------------------------------------------------------------------------
# Wrapper
# ----------------------------------------------------------------------------
def ssim_pallas(img1: jax.Array, img2: jax.Array, kernel_size: int = 11) -> jax.Array:
    """SSIM with return_batch_average=True. img1/img2: (N, C, H, W)."""
    assert img1.shape == img2.shape and img1.ndim == 4
    N, C, H, W = img1.shape
    nc = N * C
    k1d = gaussian_kernel_1d(kernel_size, 1.5)

    m_h = _banded_conv_matrix(H, k1d)          # (H, H): left-multiplied  (H pass)
    m_w_t = _banded_conv_matrix(W, k1d).T      # (W, W): right-multiplied (W pass)

    in_itemsize = jnp.dtype(img1.dtype).itemsize
    per = _pick_images_per_block(nc, H, W, in_itemsize)
    grid = pl.cdiv(nc, per)
    needs_mask = (nc % per) != 0

    est = _block_vmem_bytes(per, H, W, in_itemsize)
    if per == 1 and est > _BLOCK_VMEM_BUDGET:
        # TODO(synk): add a W-tile grid axis with a 2*radius halo for very wide images.
        raise ValueError(f"image {H}x{W} too large for a single VMEM block; "
                         "W-halo tiling not implemented")
    # VMEM limit computed from the actual block working set (v7x has only
    # 64 MiB per TensorCore), with headroom for Mosaic internals.
    vmem_limit = int(min(60 * 1024 * 1024, max(32 * 1024 * 1024, est * 3 // 2)))

    # Free reshape (no HBM copy); inputs keep their dtype, cast happens in-kernel.
    x3 = img1.reshape(nc, H, W)
    y3 = img2.reshape(nc, H, W)

    mwt = jnp.asarray(m_w_t).astype(jnp.bfloat16)   # (W, W) bf16 MXU operand
    mh = jnp.asarray(m_h).astype(jnp.bfloat16)      # (H, H) bf16 MXU operand

    kernel = functools.partial(
        _ssim_block_kernel,
        nc_total=nc,
        needs_mask=needs_mask,
        c1=0.01 ** 2,      # data_range hard-coded to 1.0, as in the module
        c2=0.03 ** 2,
    )

    partials = pl.pallas_call(
        kernel,
        out_shape=jax.ShapeDtypeStruct((grid, 1, W), jnp.float32),
        grid_spec=pltpu.PrefetchScalarGridSpec(
            num_scalar_prefetch=0,
            grid=(grid,),
            in_specs=[
                pl.BlockSpec((per, H, W), lambda i: (i, 0, 0)),
                pl.BlockSpec((per, H, W), lambda i: (i, 0, 0)),
                # Conv matrices: same (tiny) block every step -> fetched once,
                # kept resident by the pipeline.
                pl.BlockSpec((W, W), lambda i: (0, 0)),
                pl.BlockSpec((H, H), lambda i: (0, 0)),
            ],
            out_specs=pl.BlockSpec((1, 1, W), lambda i: (i, 0, 0)),
        ),
        compiler_params=pltpu.CompilerParams(
            dimension_semantics=("parallel",),     # megacore on v7x
            vmem_limit_bytes=vmem_limit,
        ),
    )(x3, y3, mwt, mh)

    # Tiny final reduction (grid blocks x W lanes) and the global mean.
    return jnp.sum(partials) / jnp.float32(N * C * H * W)


# ----------------------------------------------------------------------------
# Pure-JAX f32 reference (direct 11x11 zero-padded conv), for correctness check
# ----------------------------------------------------------------------------
def _ssim_reference(img1, img2, kernel_size=11):
    k1d = gaussian_kernel_1d(kernel_size, 1.5)
    k2d = np.outer(k1d, k1d)
    r = kernel_size // 2
    H, W = img1.shape[-2:]

    def blur(a):
        ap = jnp.pad(a, ((0, 0), (0, 0), (r, r), (r, r)))
        out = jnp.zeros_like(a)
        for u in range(kernel_size):
            for v in range(kernel_size):
                out = out + float(k2d[u, v]) * ap[..., u:u + H, v:v + W]
        return out

    mu_x = blur(img1)
    mu_y = blur(img2)
    mu_x2, mu_y2, mu_xy = mu_x * mu_x, mu_y * mu_y, mu_x * mu_y
    var_x = blur(img1 * img1) - mu_x2
    var_y = blur(img2 * img2) - mu_y2
    cov = blur(img1 * img2) - mu_xy
    c1, c2 = 0.01 ** 2, 0.03 ** 2
    m = ((2 * mu_xy + c1) * (2 * cov + c2)) / ((mu_x2 + mu_y2 + c1) * (var_x + var_y + c2))
    return jnp.mean(m)


if __name__ == "__main__":
    key = jax.random.PRNGKey(0)
    k1, k2 = jax.random.split(key)
    N, C, H, W = 2, 4, 16, 16
    img1 = jax.random.uniform(k1, (N, C, H, W), dtype=jnp.float32)
    img2 = jax.random.uniform(k2, (N, C, H, W), dtype=jnp.float32)

    result = jax.block_until_ready(ssim_pallas(img1, img2, kernel_size=11))
    assert result.shape == () and bool(jnp.isfinite(result))

    ref = jax.block_until_ready(_ssim_reference(img1, img2, kernel_size=11))
    # bf16 MXU operands (inputs, products, Gaussian weights, W-pass intermediate)
    # introduce ~2^-9 relative quantization; f32 accumulation keeps the rest
    # exact, so a 5e-3 absolute tolerance on the mean SSIM is comfortable.
    assert abs(float(result) - float(ref)) < 5e-3, (float(result), float(ref))

    print("KERNEL_OK")
</pallas_src>

<mosaic_0001>
module attributes {stable_mosaic.version = 11 : i64} {
  func.func @_ssim_block_kernel(%arg0: i32, %arg1: memref<4x16x16xf32, #tpu.memory_space<vmem>>, %arg2: memref<4x16x16xf32, #tpu.memory_space<vmem>>, %arg3: memref<16x16xbf16, #tpu.memory_space<vmem>>, %arg4: memref<16x16xbf16, #tpu.memory_space<vmem>>, %arg5: memref<1x1x16xf32, #tpu.memory_space<vmem>>) attributes {dimension_semantics = [#tpu.dimension_semantics<parallel>], iteration_bounds = array<i64: 2>, scalar_prefetch = 0 : i64, scratch_operands = 0 : i64, tpu.core_type = #tpu.core_type<tc>, window_params = [{transform_indices = @transform_0, window_bounds = array<i64: 4, 16, 16>}, {transform_indices = @transform_1, window_bounds = array<i64: 4, 16, 16>}, {pipeline_mode = #tpu.pipeline_mode<synchronous>, transform_indices = @transform_2, window_bounds = array<i64: 16, 16>}, {pipeline_mode = #tpu.pipeline_mode<synchronous>, transform_indices = @transform_3, window_bounds = array<i64: 16, 16>}, {transform_indices = @transform_4, window_bounds = array<i64: 1, 1, 16>}]} {
    %c0 = arith.constant 0 : index
    %c0_0 = arith.constant 0 : index
    %c0_1 = arith.constant 0 : index
    %0 = vector.load %arg1[%c0, %c0_0, %c0_1] : memref<4x16x16xf32, #tpu.memory_space<vmem>>, vector<4x16x16xf32>
    %c0_2 = arith.constant 0 : index
    %c0_3 = arith.constant 0 : index
    %c0_4 = arith.constant 0 : index
    %1 = vector.load %arg2[%c0_2, %c0_3, %c0_4] : memref<4x16x16xf32, #tpu.memory_space<vmem>>, vector<4x16x16xf32>
    %2 = arith.mulf %0, %0 : vector<4x16x16xf32>
    %3 = arith.mulf %1, %1 : vector<4x16x16xf32>
    %4 = arith.mulf %0, %1 : vector<4x16x16xf32>
    %5 = arith.truncf %0 : vector<4x16x16xf32> to vector<4x16x16xbf16>
    %6 = vector.shape_cast %5 : vector<4x16x16xbf16> to vector<64x16xbf16>
    %7 = arith.truncf %1 : vector<4x16x16xf32> to vector<4x16x16xbf16>
    %8 = vector.shape_cast %7 : vector<4x16x16xbf16> to vector<64x16xbf16>
    %9 = arith.truncf %2 : vector<4x16x16xf32> to vector<4x16x16xbf16>
    %10 = vector.shape_cast %9 : vector<4x16x16xbf16> to vector<64x16xbf16>
    %11 = arith.truncf %3 : vector<4x16x16xf32> to vector<4x16x16xbf16>
    %12 = vector.shape_cast %11 : vector<4x16x16xbf16> to vector<64x16xbf16>
    %13 = arith.truncf %4 : vector<4x16x16xf32> to vector<4x16x16xbf16>
    %14 = vector.shape_cast %13 : vector<4x16x16xbf16> to vector<64x16xbf16>
    %15 = tpu.concatenate %6, %8, %10, %12, %14 in 0 : vector<64x16xbf16>, vector<64x16xbf16>, vector<64x16xbf16>, vector<64x16xbf16>, vector<64x16xbf16> -> vector<320x16xbf16>
    %c0_5 = arith.constant 0 : index
    %c0_6 = arith.constant 0 : index
    %16 = vector.load %arg3[%c0_5, %c0_6] : memref<16x16xbf16, #tpu.memory_space<vmem>>, vector<16x16xbf16>
    %cst = arith.constant dense<0.000000e+00> : vector<320x16xf32>
    %17 = tpu.matmul %15, %16, %cst {dimension_numbers = #tpu.dot_dimension_numbers<[1], [0], [0], [1], [0, 0, 1, 1], [], []>} : vector<320x16xbf16>, vector<16x16xbf16>, vector<320x16xf32> -> vector<320x16xf32>
    %18 = vector.shape_cast %17 : vector<320x16xf32> to vector<20x16x16xf32>
    %19 = arith.truncf %18 : vector<20x16x16xf32> to vector<20x16x16xbf16>
    %c0_7 = arith.constant 0 : index
    %c0_8 = arith.constant 0 : index
    %20 = vector.load %arg4[%c0_7, %c0_8] : memref<16x16xbf16, #tpu.memory_space<vmem>>, vector<16x16xbf16>
    %21 = vector.shape_cast %20 : vector<16x16xbf16> to vector<1x16x16xbf16>
    %22 = vector.broadcast %21 : vector<1x16x16xbf16> to vector<20x16x16xbf16>
    %cst_9 = arith.constant dense<0.000000e+00> : vector<20x16x16xf32>
    %23 = tpu.matmul %22, %19, %cst_9 {dimension_numbers = #tpu.dot_dimension_numbers<[2], [1], [1], [2], [0, 0, 0, 1, 1, 2], [0], [0]>} : vector<20x16x16xbf16>, vector<20x16x16xbf16>, vector<20x16x16xf32> -> vector<20x16x16xf32>
    %24 = vector.extract_strided_slice %23 {offsets = [0, 0, 0], sizes = [4, 16, 16], strides = [1, 1, 1]} : vector<20x16x16xf32> to vector<4x16x16xf32>
    %25 = vector.extract_strided_slice %23 {offsets = [4, 0, 0], sizes = [4, 16, 16], strides = [1, 1, 1]} : vector<20x16x16xf32> to vector<4x16x16xf32>
    %26 = vector.extract_strided_slice %23 {offsets = [8, 0, 0], sizes = [4, 16, 16], strides = [1, 1, 1]} : vector<20x16x16xf32> to vector<4x16x16xf32>
    %27 = vector.extract_strided_slice %23 {offsets = [12, 0, 0], sizes = [4, 16, 16], strides = [1, 1, 1]} : vector<20x16x16xf32> to vector<4x16x16xf32>
    %28 = vector.extract_strided_slice %23 {offsets = [16, 0, 0], sizes = [4, 16, 16], strides = [1, 1, 1]} : vector<20x16x16xf32> to vector<4x16x16xf32>
    %29 = arith.mulf %24, %24 : vector<4x16x16xf32>
    %30 = arith.mulf %25, %25 : vector<4x16x16xf32>
    %31 = arith.mulf %24, %25 : vector<4x16x16xf32>
    %32 = arith.subf %26, %29 : vector<4x16x16xf32>
    %33 = arith.subf %27, %30 : vector<4x16x16xf32>
    %34 = arith.subf %28, %31 : vector<4x16x16xf32>
    %cst_10 = arith.constant 2.000000e+00 : f32
    %35 = vector.broadcast %cst_10 : f32 to vector<4x16x16xf32>
    %36 = arith.mulf %35, %31 : vector<4x16x16xf32>
    %cst_11 = arith.constant 9.99999974E-5 : f32
    %37 = vector.broadcast %cst_11 : f32 to vector<4x16x16xf32>
    %38 = arith.addf %36, %37 : vector<4x16x16xf32>
    %cst_12 = arith.constant 2.000000e+00 : f32
    %39 = vector.broadcast %cst_12 : f32 to vector<4x16x16xf32>
    %40 = arith.mulf %39, %34 : vector<4x16x16xf32>
    %cst_13 = arith.constant 8.99999984E-4 : f32
    %41 = vector.broadcast %cst_13 : f32 to vector<4x16x16xf32>
    %42 = arith.addf %40, %41 : vector<4x16x16xf32>
    %43 = arith.mulf %38, %42 : vector<4x16x16xf32>
    %44 = arith.addf %29, %30 : vector<4x16x16xf32>
    %cst_14 = arith.constant 9.99999974E-5 : f32
    %45 = vector.broadcast %cst_14 : f32 to vector<4x16x16xf32>
    %46 = arith.addf %44, %45 : vector<4x16x16xf32>
    %47 = arith.addf %32, %33 : vector<4x16x16xf32>
    %cst_15 = arith.constant 8.99999984E-4 : f32
    %48 = vector.broadcast %cst_15 : f32 to vector<4x16x16xf32>
    %49 = arith.addf %47, %48 : vector<4x16x16xf32>
    %50 = arith.mulf %46, %49 : vector<4x16x16xf32>
    %51 = tpu.reciprocal %50 {approx = true} : vector<4x16x16xf32> -> vector<4x16x16xf32>
    %52 = arith.mulf %50, %51 : vector<4x16x16xf32>
    %cst_16 = arith.constant 2.000000e+00 : f32
    %53 = vector.broadcast %cst_16 : f32 to vector<4x16x16xf32>
    %54 = arith.subf %53, %52 : vector<4x16x16xf32>
    %55 = arith.mulf %51, %54 : vector<4x16x16xf32>
    %56 = arith.mulf %43, %55 : vector<4x16x16xf32>
    %cst_17 = arith.constant dense<0.000000e+00> : vector<16xf32>
    %57 = vector.multi_reduction <add>, %56, %cst_17 [0, 1] : vector<4x16x16xf32> to vector<16xf32>
    %58 = vector.shape_cast %57 : vector<16xf32> to vector<1x1x16xf32>
    %c0_18 = arith.constant 0 : index
    %c0_19 = arith.constant 0 : index
    %c0_20 = arith.constant 0 : index
    %59 = vector.load %arg5[%c0_18, %c0_19, %c0_20] : memref<1x1x16xf32, #tpu.memory_space<vmem>>, vector<1x1x16xf32>
    tpu.vector_store %arg5[%c0_18, %c0_19, %c0_20], %58 {strides = array<i32>} : memref<1x1x16xf32, #tpu.memory_space<vmem>>, vector<1x1x16xf32>,
    return
  }
  func.func @transform_0(%arg0: i32) -> (i32, i32, i32) {
    %c0_i32 = arith.constant 0 : i32
    %c0_i32_0 = arith.constant 0 : i32
    %c0_i32_1 = arith.constant 0 : i32
    return %arg0, %c0_i32, %c0_i32_0 : i32, i32, i32
  }
  func.func @transform_1(%arg0: i32) -> (i32, i32, i32) {
    %c0_i32 = arith.constant 0 : i32
    %c0_i32_0 = arith.constant 0 : i32
    %c0_i32_1 = arith.constant 0 : i32
    return %arg0, %c0_i32, %c0_i32_0 : i32, i32, i32
  }
  func.func @transform_2(%arg0: i32) -> (i32, i32) {
    %c0_i32 = arith.constant 0 : i32
    %c0_i32_0 = arith.constant 0 : i32
    %c0_i32_1 = arith.constant 0 : i32
    return %c0_i32, %c0_i32_0 : i32, i32
  }
  func.func @transform_3(%arg0: i32) -> (i32, i32) {
    %c0_i32 = arith.constant 0 : i32
    %c0_i32_0 = arith.constant 0 : i32
    %c0_i32_1 = arith.constant 0 : i32
    return %c0_i32, %c0_i32_0 : i32, i32
  }
  func.func @transform_4(%arg0: i32) -> (i32, i32, i32) {
    %c0_i32 = arith.constant 0 : i32
    %c0_i32_0 = arith.constant 0 : i32
    %c0_i32_1 = arith.constant 0 : i32
    return %arg0, %c0_i32, %c0_i32_0 : i32, i32, i32
  }
}

</mosaic_0001>

<llo_original>
// kernel: tpu_custom_call.1
$region0: #{tpu_custom_call.1}
  #allocation0 [shape = 'u32[]', space=smem, size = 0x4, offset = 0x4, fixed_abs, tag = 'smem constant byte address 0x4 - core index']
  #allocation1 [shape = 'u32[72,128]{1,0:T(1,128)}', space=vmem, size = 0x9000, scoped, tag = 'internal scratch']
  %s0 = inlined_call_operand.hbm [shape: f32[8,16,16], index: 0, kind: input, shape index: {}]
  %s1 = inlined_call_operand.hbm [shape: f32[8,16,16], index: 1, kind: input, shape index: {}]
  %s2 = inlined_call_operand.hbm [shape: bf16[16,16], index: 2, kind: input, shape index: {}]
  %s3 = inlined_call_operand.hbm [shape: bf16[16,16], index: 3, kind: input, shape index: {}]
  %s4 = inlined_call_operand.hbm [shape: f32[2,1,16], index: 4, kind: output, shape index: {}]
  %s5 = sld [smem:[#allocation0]]
  $region65: #{tpu_custom_call.1} parent=0
    _
  %s7 = ssub.s32 1, %s5
  %s8 = scalar_select 0, %s7, %s5
  $region1: #{tpu_custom_call.1} parent=0
    #allocation2 [shape = 'u8[65536]{0}', space=vmem, size = 0x10000, scoped, tag = 'input window, operand 0']
    #allocation3 [shape = 's32[2]{0}', space=sflag, size = 0x8, scoped, tag = 'scoped memory for tpu_custom_call.1']
    #allocation4 [shape = 's32[2]{0}', space=sflag, size = 0x8, scoped, tag = 'scoped memory for tpu_custom_call.1']
    #allocation5 [shape = 'u8[65536]{0}', space=vmem, size = 0x10000, scoped, tag = 'input window, operand 1']
    #allocation6 [shape = 's32[2]{0}', space=sflag, size = 0x8, scoped, tag = 'scoped memory for tpu_custom_call.1']
    #allocation7 [shape = 'u8[4096]{0}', space=vmem, size = 0x1000, scoped, tag = 'input window, operand 2, single buffered']
    #allocation8 [shape = 'u8[4096]{0}', space=vmem, size = 0x1000, scoped, tag = 'input window, operand 3, single buffered']
    #allocation9 [shape = 's32[1]{0}', space=sflag, size = 0x4, scoped, tag = 'scoped memory for tpu_custom_call.1']
    #allocation10 [shape = 'u8[1024]{0}', space=vmem, size = 0x400, scoped, tag = 'output window, operand 0']
    %9 = vsyncpa [#allocation3], 0
    %s10 = scalar_lea.sflag [#allocation3], 1
    %11 = vsyncpa %s10, 0
    %12 = vsyncpa [#allocation6], 0
    %s13 = scalar_lea.sflag [#allocation6], 1
    %14 = vsyncpa %s13, 0
    %15 = vsyncpa [#allocation9], 0
    %16 = vsyncpa [#allocation4], 0
    %s17 = scalar_lea.sflag [#allocation4], 1
    %18 = vsyncpa %s17, 0
    loop: start=0, step=1, limit=4
    $region2: #{tpu_custom_call.1} parent=1 // loop_pre_header
      _
    $region3: #{tpu_custom_call.1} parent=1 // loop_header
      %s20 = sphi 0, %s24
      %p21 = scmp.ge.s32.totalorder %s20, 4
      %s30 = sphi 0, %s32
      %s33 = sphi 0, %s30
      %s34 = sphi 0, %s33
      %s50 = sphi 0, %s34
      %s56 = sphi 0, %s58
      %s59 = sphi 0, %s56
      %s60 = sphi 0, %s59
      %s76 = sphi 0, %s60
      %s80 = sphi 0, %s80
      %s82 = sphi 0, %s80
      %s83 = sphi 0, %s82
      %s97 = sphi 0, %s83
      %s101 = sphi 0, %s101
      %s103 = sphi 0, %s101
      %s104 = sphi 0, %s103
      %s118 = sphi 0, %s104
      %s124 = sphi 0, %s126
      %s127 = sphi 0, %s124
      %s128 = sphi 0, %s127
      %s144 = sphi 0, %s128
    $region4: #{tpu_custom_call.1} parent=1 // loop_header_branch
      %23 = sbr.rel (%p21) target = $region8
    $region5: #{tpu_custom_call.1} parent=1 // loop_body
      %s25 = ssub.s32 %s20, 1
      %s26 = ssub.s32 %s20, 2
      %s27 = sadd.s32 %s20, 1
      %s28 = ssub.s32 %s20, %s27
      %p29 = scmp.eq.s32.totalorder %s28, 0
      %s31 = sadd.s32 %s30, 1
      %s32 = scalar_select %p29, %s30, %s31
      %p35 = pneg %p29
      %p36 = scmp.eq.s32.totalorder %s20, 1
      %p37 = por %p35, %p36
      %p38 = scmp.ne.s32.totalorder %s30, %s33
      %p39 = scmp.eq.s32.totalorder %s20, 0
      %p40 = por %p38, %p39
      %p41 = scmp.ne.s32.totalorder %s30, %s33
      %p42 = scmp.eq.s32.totalorder %s25, 1
      %p43 = por %p41, %p42
      %p44 = scmp.ne.s32.totalorder %s33, %s34
      %p45 = scmp.eq.s32.totalorder %s25, 0
      %p46 = por %p44, %p45
      %p47 = scmp.ne.s32.totalorder %s33, %s34
      %p48 = scmp.eq.s32.totalorder %s26, 1
      %p49 = por %p47, %p48
      %p51 = scmp.ne.s32.totalorder %s34, %s50
      %p52 = scmp.eq.s32.totalorder %s26, 0
      %p53 = por %p51, %p52
      %s54 = ssub.s32 %s20, %s27
      %p55 = scmp.eq.s32.totalorder %s54, 0
      %s57 = sadd.s32 %s56, 1
      %s58 = scalar_select %p55, %s56, %s57
      %p61 = pneg %p55
      %p62 = scmp.eq.s32.totalorder %s20, 1
      %p63 = por %p61, %p62
      %p64 = scmp.ne.s32.totalorder %s56, %s59
      %p65 = scmp.eq.s32.totalorder %s20, 0
      %p66 = por %p64, %p65
      %p67 = scmp.ne.s32.totalorder %s56, %s59
      %p68 = scmp.eq.s32.totalorder %s25, 1
      %p69 = por %p67, %p68
      %p70 = scmp.ne.s32.totalorder %s59, %s60
      %p71 = scmp.eq.s32.totalorder %s25, 0
      %p72 = por %p70, %p71
      %p73 = scmp.ne.s32.totalorder %s59, %s60
      %p74 = scmp.eq.s32.totalorder %s26, 1
      %p75 = por %p73, %p74
      %p77 = scmp.ne.s32.totalorder %s60, %s76
      %p78 = scmp.eq.s32.totalorder %s26, 0
      %p79 = por %p77, %p78
      %s81 = sadd.s32 %s80, 1
      %p84 = scmp.eq.s32.totalorder %s20, 1
      %p85 = scmp.ne.s32.totalorder %s80, %s82
      %p86 = scmp.eq.s32.totalorder %s20, 0
      %p87 = por %p85, %p86
      %p88 = scmp.ne.s32.totalorder %s80, %s82
      %p89 = scmp.eq.s32.totalorder %s25, 1
      %p90 = por %p88, %p89
      %p91 = scmp.ne.s32.totalorder %s82, %s83
      %p92 = scmp.eq.s32.totalorder %s25, 0
      %p93 = por %p91, %p92
      %p94 = scmp.ne.s32.totalorder %s82, %s83
      %p95 = scmp.eq.s32.totalorder %s26, 1
      %p96 = por %p94, %p95
      %p98 = scmp.ne.s32.totalorder %s83, %s97
      %p99 = scmp.eq.s32.totalorder %s26, 0
      %p100 = por %p98, %p99
      %s102 = sadd.s32 %s101, 1
      %p105 = scmp.eq.s32.totalorder %s20, 1
      %p106 = scmp.ne.s32.totalorder %s101, %s103
      %p107 = scmp.eq.s32.totalorder %s20, 0
      %p108 = por %p106, %p107
      %p109 = scmp.ne.s32.totalorder %s101, %s103
      %p110 = scmp.eq.s32.totalorder %s25, 1
      %p111 = por %p109, %p110
      %p112 = scmp.ne.s32.totalorder %s103, %s104
      %p113 = scmp.eq.s32.totalorder %s25, 0
      %p114 = por %p112, %p113
      %p115 = scmp.ne.s32.totalorder %s103, %s104
      %p116 = scmp.eq.s32.totalorder %s26, 1
      %p117 = por %p115, %p116
      %p119 = scmp.ne.s32.totalorder %s104, %s118
      %p120 = scmp.eq.s32.totalorder %s26, 0
      %p121 = por %p119, %p120
      %s122 = ssub.s32 %s20, %s27
      %p123 = scmp.eq.s32.totalorder %s122, 0
      %s125 = sadd.s32 %s124, 1
      %s126 = scalar_select %p123, %s124, %s125
      %p129 = pneg %p123
      %p130 = scmp.eq.s32.totalorder %s20, 1
      %p131 = por %p129, %p130
      %p132 = scmp.ne.s32.totalorder %s124, %s127
      %p133 = scmp.eq.s32.totalorder %s20, 0
      %p134 = por %p132, %p133
      %p135 = scmp.ne.s32.totalorder %s124, %s127
      %p136 = scmp.eq.s32.totalorder %s25, 1
      %p137 = por %p135, %p136
      %p138 = scmp.ne.s32.totalorder %s127, %s128
      %p139 = scmp.eq.s32.totalorder %s25, 0
      %p140 = por %p138, %p139
      %p141 = scmp.ne.s32.totalorder %s127, %s128
      %p142 = scmp.eq.s32.totalorder %s26, 1
      %p143 = por %p141, %p142
      %p145 = scmp.ne.s32.totalorder %s128, %s144
      %p146 = scmp.eq.s32.totalorder %s26, 0
      %p147 = por %p145, %p146
      %p148 = scmp.le.s32.totalorder 1, %s20
      %p149 = scmp.lt.s32.totalorder %s20, 3
      %p150 = pnand %p148, %p149
      %p151 = pneg %p150
      // Predicated region
      $region9: #{tpu_custom_call.1} parent=5 // pred_check
        _
      $region10: #{tpu_custom_call.1} parent=5 // pred_check_branch
        %153 = sbr.rel (%p150) target = $region12
      $region11: #{tpu_custom_call.1} parent=5 // pred_region
        %s154 = ssub.s32 %s20, 1
        // Predicated region
        $region13: #{tpu_custom_call.1} parent=11 // pred_check
          %p155 = pneg %p93
        $region14: #{tpu_custom_call.1} parent=11 // pred_check_branch
          %157 = sbr.rel (%p155) target = $region16
        $region15: #{tpu_custom_call.1} parent=11 // pred_region
          %159 = vsyncadd [#allocation6], 0
          %s160 = sshll.u32 %s2, 4
          %s161 = int_to_ptr.hbm [resolvable:$true] %s160
          %s162 = sshll.u32 [#allocation7], 4
          %s163 = int_to_ptr.vmem [resolvable:$true] %s162
          %168 = dma.hbm_to_vmem [thread:$0]  %s161, 128, %s163, [#allocation6], 64, 64, 4
        $region16: #{tpu_custom_call.1} parent=11 // pred_fallthru
          _
        // Predicated region
        $region17: #{tpu_custom_call.1} parent=11 // pred_check
          %p169 = pneg %p114
        $region18: #{tpu_custom_call.1} parent=11 // pred_check_branch
          %171 = sbr.rel (%p169) target = $region20
        $region19: #{tpu_custom_call.1} parent=11 // pred_region
          %173 = vsyncadd [#allocation9], 0
          %s174 = sshll.u32 %s3, 4
          %s175 = int_to_ptr.hbm [resolvable:$true] %s174
          %s176 = sshll.u32 [#allocation8], 4
          %s177 = int_to_ptr.vmem [resolvable:$true] %s176
          %182 = dma.hbm_to_vmem [thread:$0]  %s175, 128, %s177, [#allocation9], 64, 64, 4
        $region20: #{tpu_custom_call.1} parent=11 // pred_fallthru
          _
      $region12: #{tpu_custom_call.1} parent=5 // pred_fallthru
        _
      %p183 = scmp.lt.s32.totalorder %s20, 2
      // Predicated region
      $region21: #{tpu_custom_call.1} parent=5 // pred_check
        %p184 = pneg %p183
      $region22: #{tpu_custom_call.1} parent=5 // pred_check_branch
        %186 = sbr.rel (%p184) target = $region24
      $region23: #{tpu_custom_call.1} parent=5 // pred_region
        // Predicated region
        $region25: #{tpu_custom_call.1} parent=23 // pred_check
          %p187 = pneg %p40
        $region26: #{tpu_custom_call.1} parent=23 // pred_check_branch
          %189 = sbr.rel (%p187) target = $region28
        $region27: #{tpu_custom_call.1} parent=23 // pred_region
          %s190 = sand.u32 %s30, 1
          %s191 = scalar_lea.sflag [#allocation3], %s190
          %s192 = sand.u32 %s30, 1
          %s193 = smul.addr %s192, 64
          %s194 = scalar_lea.vmem [#allocation2], %s193
          %s195 = smul.u32 4, %s20
          %197 = vsyncadd %s191, 0
          %s198 = smul.addr %s195, 2
          %s199 = smul.addr %s198, 8
          %s200 = scalar_lea.hbm %s0, %s199
          %s201 = sshll.u32 %s200, 4
          %s202 = int_to_ptr.hbm [resolvable:$true] %s201
          %s203 = sshll.u32 %s194, 4
          %s204 = int_to_ptr.vmem [resolvable:$true] %s203
          %209 = dma.hbm_to_vmem [thread:$0]  %s202, 1024, %s204, %s191, 128, 128, 8
        $region28: #{tpu_custom_call.1} parent=23 // pred_fallthru
          _
        // Predicated region
        $region29: #{tpu_custom_call.1} parent=23 // pred_check
          %p210 = pneg %p66
        $region30: #{tpu_custom_call.1} parent=23 // pred_check_branch
          %212 = sbr.rel (%p210) target = $region32
        $region31: #{tpu_custom_call.1} parent=23 // pred_region
          %s213 = sand.u32 %s20, 1
          %s214 = scalar_lea.sflag [#allocation6], %s213
          %s215 = sand.u32 %s56, 1
          %s216 = smul.addr %s215, 64
          %s217 = scalar_lea.vmem [#allocation5], %s216
          %s218 = smul.u32 4, %s20
          %220 = vsyncadd %s214, 0
          %s221 = smul.addr %s218, 2
          %s222 = smul.addr %s221, 8
          %s223 = scalar_lea.hbm %s1, %s222
          %s224 = sshll.u32 %s223, 4
          %s225 = int_to_ptr.hbm [resolvable:$true] %s224
          %s226 = sshll.u32 %s217, 4
          %s227 = int_to_ptr.vmem [resolvable:$true] %s226
          %232 = dma.hbm_to_vmem [thread:$0]  %s225, 1024, %s227, %s214, 128, 128, 8
        $region32: #{tpu_custom_call.1} parent=23 // pred_fallthru
          _
      $region24: #{tpu_custom_call.1} parent=5 // pred_fallthru
        _
      %p233 = scmp.le.s32.totalorder 1, %s20
      %p234 = scmp.lt.s32.totalorder %s20, 3
      %p235 = pnand %p233, %p234
      %p236 = pneg %p235
      // Predicated region
      $region33: #{tpu_custom_call.1} parent=5 // pred_check
        _
      $region34: #{tpu_custom_call.1} parent=5 // pred_check_branch
        %238 = sbr.rel (%p235) target = $region36
      $region35: #{tpu_custom_call.1} parent=5 // pred_region
        %s239 = ssub.s32 %s20, 1
        %s240 = sand.u32 %s33, 1
        %s241 = scalar_lea.sflag [#allocation3], %s240
        %s242 = sand.u32 %s33, 1
        %s243 = smul.addr %s242, 64
        %s244 = scalar_lea.vmem [#allocation2], %s243
        // Predicated region
        $region37: #{tpu_custom_call.1} parent=35 // pred_check
          %p245 = pneg %p46
        $region38: #{tpu_custom_call.1} parent=35 // pred_check_branch
          %247 = sbr.rel (%p245) target = $region40
        $region39: #{tpu_custom_call.1} parent=35 // pred_region
          %249 = dma.done %s241, 1024
        $region40: #{tpu_custom_call.1} parent=35 // pred_fallthru
          _
        %s250 = sand.u32 %s25, 1
        %s251 = scalar_lea.sflag [#allocation6], %s250
        %s252 = sand.u32 %s59, 1
        %s253 = smul.addr %s252, 64
        %s254 = scalar_lea.vmem [#allocation5], %s253
        // Predicated region
        $region41: #{tpu_custom_call.1} parent=35 // pred_check
          %p255 = pneg %p72
        $region42: #{tpu_custom_call.1} parent=35 // pred_check_branch
          %257 = sbr.rel (%p255) target = $region44
        $region43: #{tpu_custom_call.1} parent=35 // pred_region
          %259 = dma.done %s251, 1024
        $region44: #{tpu_custom_call.1} parent=35 // pred_fallthru
          _
        // Predicated region
        $region45: #{tpu_custom_call.1} parent=35 // pred_check
          %p260 = pneg %p93
        $region46: #{tpu_custom_call.1} parent=35 // pred_check_branch
          %262 = sbr.rel (%p260) target = $region48
        $region47: #{tpu_custom_call.1} parent=35 // pred_region
          %264 = dma.done [#allocation6], 128
        $region48: #{tpu_custom_call.1} parent=35 // pred_fallthru
          _
        // Predicated region
        $region49: #{tpu_custom_call.1} parent=35 // pred_check
          %p265 = pneg %p114
        $region50: #{tpu_custom_call.1} parent=35 // pred_check_branch
          %267 = sbr.rel (%p265) target = $region52
        $region51: #{tpu_custom_call.1} parent=35 // pred_region
          %269 = dma.done [#allocation9], 128
        $region52: #{tpu_custom_call.1} parent=35 // pred_fallthru
          _
        %s270 = sand.u32 %s33, 1
        %s271 = scalar_lea.sflag [#allocation3], %s270
        %s272 = sand.u32 %s33, 1
        %s273 = smul.addr %s272, 64
        %s274 = scalar_lea.vmem [#allocation2], %s273
        %p275 = pneg %p46
        %p276 = pneg %p43
        %s277 = sand.u32 %s25, 1
        %s278 = scalar_lea.sflag [#allocation6], %s277
        %s279 = sand.u32 %s59, 1
        %s280 = smul.addr %s279, 64
        %s281 = scalar_lea.vmem [#allocation5], %s280
        %p282 = pneg %p72
        %p283 = pneg %p69
        %p284 = pneg %p93
        %p285 = pneg %p90
        %p286 = pneg %p114
        %p287 = pneg %p111
        %p288 = pneg %p140
        %p289 = pneg %p137
        %s290 = sand.u32 %s127, 1
        %s291 = scalar_lea.sflag [#allocation4], %s290
        %s292 = sand.u32 %s127, 1
        %s293 = scalar_lea.vmem [#allocation10], %s292
        %s294 = smul.u32 4, %s25
        %s295 = smul.u32 4, %s25
        %v297 = vld [vmem:[%s244] sm:$0xff]
        %v298 = vld [vmem:[%s244 + $0x8] sm:$0xff]
        %v299 = vld [vmem:[%s244 + $0x10] sm:$0xff]
        %v300 = vld [vmem:[%s244 + $0x18] sm:$0xff]
        %v301 = vld [vmem:[%s244 + $0x20] sm:$0xff]
        %v302 = vld [vmem:[%s244 + $0x28] sm:$0xff]
        %v303 = vld [vmem:[%s244 + $0x30] sm:$0xff]
        %v304 = vld [vmem:[%s244 + $0x38] sm:$0xff]
        %v305 = vld [vmem:[%s254] sm:$0xff]
        %v306 = vld [vmem:[%s254 + $0x8] sm:$0xff]
        %v307 = vld [vmem:[%s254 + $0x10] sm:$0xff]
        %v308 = vld [vmem:[%s254 + $0x18] sm:$0xff]
        %v309 = vld [vmem:[%s254 + $0x20] sm:$0xff]
        %v310 = vld [vmem:[%s254 + $0x28] sm:$0xff]
        %v311 = vld [vmem:[%s254 + $0x30] sm:$0xff]
        %v312 = vld [vmem:[%s254 + $0x38] sm:$0xff]
        %v313 = vmul.f32 %v297, %v297
        %v314 = vmul.f32 %v298, %v298
        %v315 = vmul.f32 %v299, %v299
        %v316 = vmul.f32 %v300, %v300
        %v317 = vmul.f32 %v301, %v301
        %v318 = vmul.f32 %v302, %v302
        %v319 = vmul.f32 %v303, %v303
        %v320 = vmul.f32 %v304, %v304
        %v321 = vmul.f32 %v305, %v305
        %v322 = vmul.f32 %v306, %v306
        %v323 = vmul.f32 %v307, %v307
        %v324 = vmul.f32 %v308, %v308
        %v325 = vmul.f32 %v309, %v309
        %v326 = vmul.f32 %v310, %v310
        %v327 = vmul.f32 %v311, %v311
        %v328 = vmul.f32 %v312, %v312
        %v329 = vmul.f32 %v297, %v305
        %v330 = vmul.f32 %v298, %v306
        %v331 = vmul.f32 %v299, %v307
        %v332 = vmul.f32 %v300, %v308
        %v333 = vmul.f32 %v301, %v309
        %v334 = vmul.f32 %v302, %v310
        %v335 = vmul.f32 %v303, %v311
        %v336 = vmul.f32 %v304, %v312
        %v337 = vpack.c.bf16 %v297, %v297
        %v338 = vpack.c.bf16 %v298, %v298
        %v339 = vpack.c.bf16 %v299, %v299
        %v340 = vpack.c.bf16 %v300, %v300
        %v341 = vpack.c.bf16 %v301, %v301
        %v342 = vpack.c.bf16 %v302, %v302
        %v343 = vpack.c.bf16 %v303, %v303
        %v344 = vpack.c.bf16 %v304, %v304
        %v345 = vpack.c.bf16 %v305, %v305
        %v346 = vpack.c.bf16 %v306, %v306
        %v347 = vpack.c.bf16 %v307, %v307
        %v348 = vpack.c.bf16 %v308, %v308
        %v349 = vpack.c.bf16 %v309, %v309
        %v350 = vpack.c.bf16 %v310, %v310
        %v351 = vpack.c.bf16 %v311, %v311
        %v352 = vpack.c.bf16 %v312, %v312
        %v353 = vpack.c.bf16 %v313, %v313
        %v354 = vpack.c.bf16 %v314, %v314
        %v355 = vpack.c.bf16 %v315, %v315
        %v356 = vpack.c.bf16 %v316, %v316
        %v357 = vpack.c.bf16 %v317, %v317
        %v358 = vpack.c.bf16 %v318, %v318
        %v359 = vpack.c.bf16 %v319, %v319
        %v360 = vpack.c.bf16 %v320, %v320
        %v361 = vpack.c.bf16 %v321, %v321
        %v362 = vpack.c.bf16 %v322, %v322
        %v363 = vpack.c.bf16 %v323, %v323
        %v364 = vpack.c.bf16 %v324, %v324
        %v365 = vpack.c.bf16 %v325, %v325
        %v366 = vpack.c.bf16 %v326, %v326
        %v367 = vpack.c.bf16 %v327, %v327
        %v368 = vpack.c.bf16 %v328, %v328
        %v369 = vpack.c.bf16 %v329, %v329
        %v370 = vpack.c.bf16 %v330, %v330
        %v371 = vpack.c.bf16 %v331, %v331
        %v372 = vpack.c.bf16 %v332, %v332
        %v373 = vpack.c.bf16 %v333, %v333
        %v374 = vpack.c.bf16 %v334, %v334
        %v375 = vpack.c.bf16 %v335, %v335
        %v376 = vpack.c.bf16 %v336, %v336
        %v385 = vunpack.c.l.b16 %v337
        %v386 = vunpack.c.l.b16 %v338
        %v387 = vunpack.c.l.b16 %v339
        %v388 = vunpack.c.l.b16 %v340
        %v389 = vunpack.c.l.b16 %v341
        %v390 = vunpack.c.l.b16 %v342
        %v391 = vunpack.c.l.b16 %v343
        %v392 = vunpack.c.l.b16 %v344
        %v393 = vpack.c.b16 %v386, %v385
        %v394 = vpack.c.b16 %v388, %v387
        %v395 = vpack.c.b16 %v390, %v389
        %v396 = vpack.c.b16 %v392, %v391
        %v405 = vunpack.c.l.b16 %v345
        %v406 = vunpack.c.l.b16 %v346
        %v407 = vunpack.c.l.b16 %v347
        %v408 = vunpack.c.l.b16 %v348
        %v409 = vunpack.c.l.b16 %v349
        %v410 = vunpack.c.l.b16 %v350
        %v411 = vunpack.c.l.b16 %v351
        %v412 = vunpack.c.l.b16 %v352
        %v413 = vpack.c.b16 %v406, %v405
        %v414 = vpack.c.b16 %v408, %v407
        %v415 = vpack.c.b16 %v410, %v409
        %v416 = vpack.c.b16 %v412, %v411
        %v425 = vunpack.c.l.b16 %v353
        %v426 = vunpack.c.l.b16 %v354
        %v427 = vunpack.c.l.b16 %v355
        %v428 = vunpack.c.l.b16 %v356
        %v429 = vunpack.c.l.b16 %v357
        %v430 = vunpack.c.l.b16 %v358
        %v431 = vunpack.c.l.b16 %v359
        %v432 = vunpack.c.l.b16 %v360
        %v433 = vpack.c.b16 %v426, %v425
        %v434 = vpack.c.b16 %v428, %v427
        %v435 = vpack.c.b16 %v430, %v429
        %v436 = vpack.c.b16 %v432, %v431
        %v445 = vunpack.c.l.b16 %v361
        %v446 = vunpack.c.l.b16 %v362
        %v447 = vunpack.c.l.b16 %v363
        %v448 = vunpack.c.l.b16 %v364
        %v449 = vunpack.c.l.b16 %v365
        %v450 = vunpack.c.l.b16 %v366
        %v451 = vunpack.c.l.b16 %v367
        %v452 = vunpack.c.l.b16 %v368
        %v453 = vpack.c.b16 %v446, %v445
        %v454 = vpack.c.b16 %v448, %v447
        %v455 = vpack.c.b16 %v450, %v449
        %v456 = vpack.c.b16 %v452, %v451
        %v465 = vunpack.c.l.b16 %v369
        %v466 = vunpack.c.l.b16 %v370
        %v467 = vunpack.c.l.b16 %v371
        %v468 = vunpack.c.l.b16 %v372
        %v469 = vunpack.c.l.b16 %v373
        %v470 = vunpack.c.l.b16 %v374
        %v471 = vunpack.c.l.b16 %v375
        %v472 = vunpack.c.l.b16 %v376
        %v473 = vpack.c.b16 %v466, %v465
        %v474 = vpack.c.b16 %v468, %v467
        %v475 = vpack.c.b16 %v470, %v469
        %v476 = vpack.c.b16 %v472, %v471
        %v477 = vld [vmem:[#allocation7] sm:$0xf]
        %v478 = vld [vmem:[#allocation7 + $0x4] sm:$0xf]
        %v481 = vunpack.c.l.b16 %v477
        %v482 = vunpack.c.l.b16 %v478
        %v483 = vpack.c.b16 %v482, %v481
        %vm485 = vcmask 130048
        %v487 = vsel %vm485, %v393, 0
        %v490 = vsel %vm485, %v394, 0
        %v493 = vsel %vm485, %v395, 0
        %v496 = vsel %vm485, %v396, 0
        %v499 = vsel %vm485, %v413, 0
        %v502 = vsel %vm485, %v414, 0
        %v505 = vsel %vm485, %v415, 0
        %v508 = vsel %vm485, %v416, 0
        %v511 = vsel %vm485, %v433, 0
        %v514 = vsel %vm485, %v434, 0
        %v517 = vsel %vm485, %v435, 0
        %v520 = vsel %vm485, %v436, 0
        %v523 = vsel %vm485, %v453, 0
        %v526 = vsel %vm485, %v454, 0
        %v529 = vsel %vm485, %v455, 0
        %v532 = vsel %vm485, %v456, 0
        %v535 = vsel %vm485, %v473, 0
        %v538 = vsel %vm485, %v474, 0
        %v541 = vsel %vm485, %v475, 0
        %v544 = vsel %vm485, %v476, 0
        %546 = vmatpush.bf16.msra.mxu0 0
        %547 = vmatpush.bf16.msra.mxu0 0
        %548 = vmatpush.bf16.msra.mxu0 0
        %549 = vmatpush.bf16.msra.mxu0 0
        %550 = vmatpush.bf16.msra.mxu0 0
        %551 = vmatpush.bf16.msra.mxu0 0
        %552 = vmatpush.bf16.msra.mxu0 0
        %553 = vmatpush.bf16.msra.mxu0 %v483
        %554 = vmatmul.bf16.gmra.mxu0 %v487
        %v555 = vpop.f32.mrf.mxu0
        %v556 = vadd.f32 0.0, %v555
        %v557 = vpop.f32.mrf.mxu0
        %v558 = vadd.f32 0.0, %v557
        %559 = vmatmul.bf16.gmra.mxu0 %v490
        %v560 = vpop.f32.mrf.mxu0
        %v561 = vadd.f32 0.0, %v560
        %v562 = vpop.f32.mrf.mxu0
        %v563 = vadd.f32 0.0, %v562
        %564 = vmatmul.bf16.gmra.mxu0 %v493
        %v565 = vpop.f32.mrf.mxu0
        %v566 = vadd.f32 0.0, %v565
        %v567 = vpop.f32.mrf.mxu0
        %v568 = vadd.f32 0.0, %v567
        %569 = vmatmul.bf16.gmra.mxu0 %v496
        %v570 = vpop.f32.mrf.mxu0
        %v571 = vadd.f32 0.0, %v570
        %v572 = vpop.f32.mrf.mxu0
        %v573 = vadd.f32 0.0, %v572
        %574 = vmatmul.bf16.gmra.mxu0 %v499
        %v575 = vpop.f32.mrf.mxu0
        %v576 = vadd.f32 0.0, %v575
        %v577 = vpop.f32.mrf.mxu0
        %v578 = vadd.f32 0.0, %v577
        %579 = vmatmul.bf16.gmra.mxu0 %v502
        %v580 = vpop.f32.mrf.mxu0
        %v581 = vadd.f32 0.0, %v580
        %v582 = vpop.f32.mrf.mxu0
        %v583 = vadd.f32 0.0, %v582
        %584 = vmatmul.bf16.gmra.mxu0 %v505
        %v585 = vpop.f32.mrf.mxu0
        %v586 = vadd.f32 0.0, %v585
        %v587 = vpop.f32.mrf.mxu0
        %v588 = vadd.f32 0.0, %v587
        %589 = vmatmul.bf16.gmra.mxu0 %v508
        %v590 = vpop.f32.mrf.mxu0
        %v591 = vadd.f32 0.0, %v590
        %v592 = vpop.f32.mrf.mxu0
        %v593 = vadd.f32 0.0, %v592
        %594 = vmatmul.bf16.gmra.mxu0 %v511
        %v595 = vpop.f32.mrf.mxu0
        %v596 = vadd.f32 0.0, %v595
        %v597 = vpop.f32.mrf.mxu0
        %v598 = vadd.f32 0.0, %v597
        %599 = vmatmul.bf16.gmra.mxu0 %v514
        %v600 = vpop.f32.mrf.mxu0
        %v601 = vadd.f32 0.0, %v600
        %v602 = vpop.f32.mrf.mxu0
        %v603 = vadd.f32 0.0, %v602
        %604 = vmatmul.bf16.gmra.mxu0 %v517
        %v605 = vpop.f32.mrf.mxu0
        %v606 = vadd.f32 0.0, %v605
        %v607 = vpop.f32.mrf.mxu0
        %v608 = vadd.f32 0.0, %v607
        %609 = vmatmul.bf16.gmra.mxu0 %v520
        %v610 = vpop.f32.mrf.mxu0
        %v611 = vadd.f32 0.0, %v610
        %v612 = vpop.f32.mrf.mxu0
        %v613 = vadd.f32 0.0, %v612
        %614 = vmatmul.bf16.gmra.mxu0 %v523
        %v615 = vpop.f32.mrf.mxu0
        %v616 = vadd.f32 0.0, %v615
        %v617 = vpop.f32.mrf.mxu0
        %v618 = vadd.f32 0.0, %v617
        %619 = vmatmul.bf16.gmra.mxu0 %v526
        %v620 = vpop.f32.mrf.mxu0
        %v621 = vadd.f32 0.0, %v620
        %v622 = vpop.f32.mrf.mxu0
        %v623 = vadd.f32 0.0, %v622
        %624 = vmatmul.bf16.gmra.mxu0 %v529
        %v625 = vpop.f32.mrf.mxu0
        %v626 = vadd.f32 0.0, %v625
        %v627 = vpop.f32.mrf.mxu0
        %v628 = vadd.f32 0.0, %v627
        %629 = vmatmul.bf16.gmra.mxu0 %v532
        %v630 = vpop.f32.mrf.mxu0
        %v631 = vadd.f32 0.0, %v630
        %v632 = vpop.f32.mrf.mxu0
        %v633 = vadd.f32 0.0, %v632
        %634 = vmatmul.bf16.gmra.mxu0 %v535
        %v635 = vpop.f32.mrf.mxu0
        %v636 = vadd.f32 0.0, %v635
        %v637 = vpop.f32.mrf.mxu0
        %v638 = vadd.f32 0.0, %v637
        %639 = vmatmul.bf16.gmra.mxu0 %v538
        %v640 = vpop.f32.mrf.mxu0
        %v641 = vadd.f32 0.0, %v640
        %v642 = vpop.f32.mrf.mxu0
        %v643 = vadd.f32 0.0, %v642
        %644 = vmatmul.bf16.gmra.mxu0 %v541
        %v645 = vpop.f32.mrf.mxu0
        %v646 = vadd.f32 0.0, %v645
        %v647 = vpop.f32.mrf.mxu0
        %v648 = vadd.f32 0.0, %v647
        %649 = vmatmul.bf16.gmra.mxu0 %v544
        %v650 = vpop.f32.mrf.mxu0
        %v651 = vadd.f32 0.0, %v650
        %v652 = vpop.f32.mrf.mxu0
        %v653 = vadd.f32 0.0, %v652
        %654 = vdwg.mxu0
        %v655 = vpack.c.bf16 %v556, %v556
        %v656 = vpack.c.bf16 %v558, %v558
        %v657 = vpack.c.bf16 %v561, %v561
        %v658 = vpack.c.bf16 %v563, %v563
        %v659 = vpack.c.bf16 %v566, %v566
        %v660 = vpack.c.bf16 %v568, %v568
        %v661 = vpack.c.bf16 %v571, %v571
        %v662 = vpack.c.bf16 %v573, %v573
        %v663 = vpack.c.bf16 %v576, %v576
        %v664 = vpack.c.bf16 %v578, %v578
        %v665 = vpack.c.bf16 %v581, %v581
        %v666 = vpack.c.bf16 %v583, %v583
        %v667 = vpack.c.bf16 %v586, %v586
        %v668 = vpack.c.bf16 %v588, %v588
        %v669 = vpack.c.bf16 %v591, %v591
        %v670 = vpack.c.bf16 %v593, %v593
        %v671 = vpack.c.bf16 %v596, %v596
        %v672 = vpack.c.bf16 %v598, %v598
        %v673 = vpack.c.bf16 %v601, %v601
        %v674 = vpack.c.bf16 %v603, %v603
        %v675 = vpack.c.bf16 %v606, %v606
        %v676 = vpack.c.bf16 %v608, %v608
        %v677 = vpack.c.bf16 %v611, %v611
        %v678 = vpack.c.bf16 %v613, %v613
        %v679 = vpack.c.bf16 %v616, %v616
        %v680 = vpack.c.bf16 %v618, %v618
        %v681 = vpack.c.bf16 %v621, %v621
        %v682 = vpack.c.bf16 %v623, %v623
        %v683 = vpack.c.bf16 %v626, %v626
        %v684 = vpack.c.bf16 %v628, %v628
        %v685 = vpack.c.bf16 %v631, %v631
        %v686 = vpack.c.bf16 %v633, %v633
        %v687 = vpack.c.bf16 %v636, %v636
        %v688 = vpack.c.bf16 %v638, %v638
        %v689 = vpack.c.bf16 %v641, %v641
        %v690 = vpack.c.bf16 %v643, %v643
        %v691 = vpack.c.bf16 %v646, %v646
        %v692 = vpack.c.bf16 %v648, %v648
        %v693 = vpack.c.bf16 %v651, %v651
        %v694 = vpack.c.bf16 %v653, %v653
        %v695 = vld [vmem:[#allocation8] sm:$0xf]
        %v696 = vld [vmem:[#allocation8 + $0x4] sm:$0xf]
        %v699 = vunpack.c.l.b16 %v695
        %v700 = vunpack.c.l.b16 %v696
        %v701 = vpack.c.b16 %v700, %v699
        %v704 = vunpack.c.l.b16 %v655
        %v705 = vunpack.c.l.b16 %v656
        %v706 = vpack.c.b16 %v705, %v704
        %v709 = vsel %vm485, %v701, 0
        %711 = vmatpush.bf16.msra.mxu0 0
        %712 = vmatpush.bf16.msra.mxu0 0
        %713 = vmatpush.bf16.msra.mxu0 0
        %714 = vmatpush.bf16.msra.mxu0 0
        %715 = vmatpush.bf16.msra.mxu0 0
        %716 = vmatpush.bf16.msra.mxu0 0
        %717 = vmatpush.bf16.msra.mxu0 0
        %718 = vmatpush.bf16.msra.mxu0 %v706
        %719 = vmatmul.bf16.gmra.mxu0 %v709
        %v720 = vpop.f32.mrf.mxu0
        %v721 = vadd.f32 0.0, %v720
        %v722 = vpop.f32.mrf.mxu0
        %v723 = vadd.f32 0.0, %v722
        %724 = vdwg.mxu0
        %v727 = vunpack.c.l.b16 %v657
        %v728 = vunpack.c.l.b16 %v658
        %v729 = vpack.c.b16 %v728, %v727
        %731 = vmatpush.bf16.msra.mxu0 0
        %732 = vmatpush.bf16.msra.mxu0 0
        %733 = vmatpush.bf16.msra.mxu0 0
        %734 = vmatpush.bf16.msra.mxu0 0
        %735 = vmatpush.bf16.msra.mxu0 0
        %736 = vmatpush.bf16.msra.mxu0 0
        %737 = vmatpush.bf16.msra.mxu0 0
        %738 = vmatpush.bf16.msra.mxu0 %v729
        %739 = vmatmul.bf16.gmra.mxu0 %v709
        %v740 = vpop.f32.mrf.mxu0
        %v741 = vadd.f32 0.0, %v740
        %v742 = vpop.f32.mrf.mxu0
        %v743 = vadd.f32 0.0, %v742
        %744 = vdwg.mxu0
        %v747 = vunpack.c.l.b16 %v659
        %v748 = vunpack.c.l.b16 %v660
        %v749 = vpack.c.b16 %v748, %v747
        %751 = vmatpush.bf16.msra.mxu0 0
        %752 = vmatpush.bf16.msra.mxu0 0
        %753 = vmatpush.bf16.msra.mxu0 0
        %754 = vmatpush.bf16.msra.mxu0 0
        %755 = vmatpush.bf16.msra.mxu0 0
        %756 = vmatpush.bf16.msra.mxu0 0
        %757 = vmatpush.bf16.msra.mxu0 0
        %758 = vmatpush.bf16.msra.mxu0 %v749
        %759 = vmatmul.bf16.gmra.mxu0 %v709
        %v760 = vpop.f32.mrf.mxu0
        %v761 = vadd.f32 0.0, %v760
        %v762 = vpop.f32.mrf.mxu0
        %v763 = vadd.f32 0.0, %v762
        %764 = vdwg.mxu0
        %v767 = vunpack.c.l.b16 %v661
        %v768 = vunpack.c.l.b16 %v662
        %v769 = vpack.c.b16 %v768, %v767
        %771 = vmatpush.bf16.msra.mxu0 0
        %772 = vmatpush.bf16.msra.mxu0 0
        %773 = vmatpush.bf16.msra.mxu0 0
        %774 = vmatpush.bf16.msra.mxu0 0
        %775 = vmatpush.bf16.msra.mxu0 0
        %776 = vmatpush.bf16.msra.mxu0 0
        %777 = vmatpush.bf16.msra.mxu0 0
        %778 = vmatpush.bf16.msra.mxu0 %v769
        %779 = vmatmul.bf16.gmra.mxu0 %v709
        %v780 = vpop.f32.mrf.mxu0
        %v781 = vadd.f32 0.0, %v780
        %v782 = vpop.f32.mrf.mxu0
        %v783 = vadd.f32 0.0, %v782
        %784 = vdwg.mxu0
        %v787 = vunpack.c.l.b16 %v663
        %v788 = vunpack.c.l.b16 %v664
        %v789 = vpack.c.b16 %v788, %v787
        %791 = vmatpush.bf16.msra.mxu0 0
        %792 = vmatpush.bf16.msra.mxu0 0
        %793 = vmatpush.bf16.msra.mxu0 0
        %794 = vmatpush.bf16.msra.mxu0 0
        %795 = vmatpush.bf16.msra.mxu0 0
        %796 = vmatpush.bf16.msra.mxu0 0
        %797 = vmatpush.bf16.msra.mxu0 0
        %798 = vmatpush.bf16.msra.mxu0 %v789
        %799 = vmatmul.bf16.gmra.mxu0 %v709
        %v800 = vpop.f32.mrf.mxu0
        %v801 = vadd.f32 0.0, %v800
        %v802 = vpop.f32.mrf.mxu0
        %v803 = vadd.f32 0.0, %v802
        %804 = vdwg.mxu0
        %v807 = vunpack.c.l.b16 %v665
        %v808 = vunpack.c.l.b16 %v666
        %v809 = vpack.c.b16 %v808, %v807
        %811 = vmatpush.bf16.msra.mxu0 0
        %812 = vmatpush.bf16.msra.mxu0 0
        %813 = vmatpush.bf16.msra.mxu0 0
        %814 = vmatpush.bf16.msra.mxu0 0
        %815 = vmatpush.bf16.msra.mxu0 0
        %816 = vmatpush.bf16.msra.mxu0 0
        %817 = vmatpush.bf16.msra.mxu0 0
        %818 = vmatpush.bf16.msra.mxu0 %v809
        %819 = vmatmul.bf16.gmra.mxu0 %v709
        %v820 = vpop.f32.mrf.mxu0
        %v821 = vadd.f32 0.0, %v820
        %v822 = vpop.f32.mrf.mxu0
        %v823 = vadd.f32 0.0, %v822
        %824 = vdwg.mxu0
        %v827 = vunpack.c.l.b16 %v667
        %v828 = vunpack.c.l.b16 %v668
        %v829 = vpack.c.b16 %v828, %v827
        %831 = vmatpush.bf16.msra.mxu0 0
        %832 = vmatpush.bf16.msra.mxu0 0
        %833 = vmatpush.bf16.msra.mxu0 0
        %834 = vmatpush.bf16.msra.mxu0 0
        %835 = vmatpush.bf16.msra.mxu0 0
        %836 = vmatpush.bf16.msra.mxu0 0
        %837 = vmatpush.bf16.msra.mxu0 0
        %838 = vmatpush.bf16.msra.mxu0 %v829
        %839 = vmatmul.bf16.gmra.mxu0 %v709
        %v840 = vpop.f32.mrf.mxu0
        %v841 = vadd.f32 0.0, %v840
        %v842 = vpop.f32.mrf.mxu0
        %v843 = vadd.f32 0.0, %v842
        %844 = vdwg.mxu0
        %v847 = vunpack.c.l.b16 %v669
        %v848 = vunpack.c.l.b16 %v670
        %v849 = vpack.c.b16 %v848, %v847
        %851 = vmatpush.bf16.msra.mxu0 0
        %852 = vmatpush.bf16.msra.mxu0 0
        %853 = vmatpush.bf16.msra.mxu0 0
        %854 = vmatpush.bf16.msra.mxu0 0
        %855 = vmatpush.bf16.msra.mxu0 0
        %856 = vmatpush.bf16.msra.mxu0 0
        %857 = vmatpush.bf16.msra.mxu0 0
        %858 = vmatpush.bf16.msra.mxu0 %v849
        %859 = vmatmul.bf16.gmra.mxu0 %v709
        %v860 = vpop.f32.mrf.mxu0
        %v861 = vadd.f32 0.0, %v860
        %v862 = vpop.f32.mrf.mxu0
        %v863 = vadd.f32 0.0, %v862
        %864 = vdwg.mxu0
        %v867 = vunpack.c.l.b16 %v671
        %v868 = vunpack.c.l.b16 %v672
        %v869 = vpack.c.b16 %v868, %v867
        %871 = vmatpush.bf16.msra.mxu0 0
        %872 = vmatpush.bf16.msra.mxu0 0
        %873 = vmatpush.bf16.msra.mxu0 0
        %874 = vmatpush.bf16.msra.mxu0 0
        %875 = vmatpush.bf16.msra.mxu0 0
        %876 = vmatpush.bf16.msra.mxu0 0
        %877 = vmatpush.bf16.msra.mxu0 0
        %878 = vmatpush.bf16.msra.mxu0 %v869
        %879 = vmatmul.bf16.gmra.mxu0 %v709
        %v880 = vpop.f32.mrf.mxu0
        %v881 = vadd.f32 0.0, %v880
        %v882 = vpop.f32.mrf.mxu0
        %v883 = vadd.f32 0.0, %v882
        %884 = vdwg.mxu0
        %v887 = vunpack.c.l.b16 %v673
        %v888 = vunpack.c.l.b16 %v674
        %v889 = vpack.c.b16 %v888, %v887
        %891 = vmatpush.bf16.msra.mxu0 0
        %892 = vmatpush.bf16.msra.mxu0 0
        %893 = vmatpush.bf16.msra.mxu0 0
        %894 = vmatpush.bf16.msra.mxu0 0
        %895 = vmatpush.bf16.msra.mxu0 0
        %896 = vmatpush.bf16.msra.mxu0 0
        %897 = vmatpush.bf16.msra.mxu0 0
        %898 = vmatpush.bf16.msra.mxu0 %v889
        %899 = vmatmul.bf16.gmra.mxu0 %v709
        %v900 = vpop.f32.mrf.mxu0
        %v901 = vadd.f32 0.0, %v900
        %v902 = vpop.f32.mrf.mxu0
        %v903 = vadd.f32 0.0, %v902
        %904 = vdwg.mxu0
        %v907 = vunpack.c.l.b16 %v675
        %v908 = vunpack.c.l.b16 %v676
        %v909 = vpack.c.b16 %v908, %v907
        %911 = vmatpush.bf16.msra.mxu0 0
        %912 = vmatpush.bf16.msra.mxu0 0
        %913 = vmatpush.bf16.msra.mxu0 0
        %914 = vmatpush.bf16.msra.mxu0 0
        %915 = vmatpush.bf16.msra.mxu0 0
        %916 = vmatpush.bf16.msra.mxu0 0
        %917 = vmatpush.bf16.msra.mxu0 0
        %918 = vmatpush.bf16.msra.mxu0 %v909
        %919 = vmatmul.bf16.gmra.mxu0 %v709
        %v920 = vpop.f32.mrf.mxu0
        %v921 = vadd.f32 0.0, %v920
        %v922 = vpop.f32.mrf.mxu0
        %v923 = vadd.f32 0.0, %v922
        %924 = vdwg.mxu0
        %v927 = vunpack.c.l.b16 %v677
        %v928 = vunpack.c.l.b16 %v678
        %v929 = vpack.c.b16 %v928, %v927
        %931 = vmatpush.bf16.msra.mxu0 0
        %932 = vmatpush.bf16.msra.mxu0 0
        %933 = vmatpush.bf16.msra.mxu0 0
        %934 = vmatpush.bf16.msra.mxu0 0
        %935 = vmatpush.bf16.msra.mxu0 0
        %936 = vmatpush.bf16.msra.mxu0 0
        %937 = vmatpush.bf16.msra.mxu0 0
        %938 = vmatpush.bf16.msra.mxu0 %v929
        %939 = vmatmul.bf16.gmra.mxu0 %v709
        %v940 = vpop.f32.mrf.mxu0
        %v941 = vadd.f32 0.0, %v940
        %v942 = vpop.f32.mrf.mxu0
        %v943 = vadd.f32 0.0, %v942
        %944 = vdwg.mxu0
        %v947 = vunpack.c.l.b16 %v679
        %v948 = vunpack.c.l.b16 %v680
        %v949 = vpack.c.b16 %v948, %v947
        %951 = vmatpush.bf16.msra.mxu0 0
        %952 = vmatpush.bf16.msra.mxu0 0
        %953 = vmatpush.bf16.msra.mxu0 0
        %954 = vmatpush.bf16.msra.mxu0 0
        %955 = vmatpush.bf16.msra.mxu0 0
        %956 = vmatpush.bf16.msra.mxu0 0
        %957 = vmatpush.bf16.msra.mxu0 0
        %958 = vmatpush.bf16.msra.mxu0 %v949
        %959 = vmatmul.bf16.gmra.mxu0 %v709
        %v960 = vpop.f32.mrf.mxu0
        %v961 = vadd.f32 0.0, %v960
        %v962 = vpop.f32.mrf.mxu0
        %v963 = vadd.f32 0.0, %v962
        %964 = vdwg.mxu0
        %v967 = vunpack.c.l.b16 %v681
        %v968 = vunpack.c.l.b16 %v682
        %v969 = vpack.c.b16 %v968, %v967
        %971 = vmatpush.bf16.msra.mxu0 0
        %972 = vmatpush.bf16.msra.mxu0 0
        %973 = vmatpush.bf16.msra.mxu0 0
        %974 = vmatpush.bf16.msra.mxu0 0
        %975 = vmatpush.bf16.msra.mxu0 0
        %976 = vmatpush.bf16.msra.mxu0 0
        %977 = vmatpush.bf16.msra.mxu0 0
        %978 = vmatpush.bf16.msra.mxu0 %v969
        %979 = vmatmul.bf16.gmra.mxu0 %v709
        %v980 = vpop.f32.mrf.mxu0
        %v981 = vadd.f32 0.0, %v980
        %v982 = vpop.f32.mrf.mxu0
        %v983 = vadd.f32 0.0, %v982
        %984 = vdwg.mxu0
        %v987 = vunpack.c.l.b16 %v683
        %v988 = vunpack.c.l.b16 %v684
        %v989 = vpack.c.b16 %v988, %v987
        %991 = vmatpush.bf16.msra.mxu0 0
        %992 = vmatpush.bf16.msra.mxu0 0
        %993 = vmatpush.bf16.msra.mxu0 0
        %994 = vmatpush.bf16.msra.mxu0 0
        %995 = vmatpush.bf16.msra.mxu0 0
        %996 = vmatpush.bf16.msra.mxu0 0
        %997 = vmatpush.bf16.msra.mxu0 0
        %998 = vmatpush.bf16.msra.mxu0 %v989
        %999 = vmatmul.bf16.gmra.mxu0 %v709
        %v1000 = vpop.f32.mrf.mxu0
        %v1001 = vadd.f32 0.0, %v1000
        %v1002 = vpop.f32.mrf.mxu0
        %v1003 = vadd.f32 0.0, %v1002
        %1004 = vdwg.mxu0
        %v1007 = vunpack.c.l.b16 %v685
        %v1008 = vunpack.c.l.b16 %v686
        %v1009 = vpack.c.b16 %v1008, %v1007
        %1011 = vmatpush.bf16.msra.mxu0 0
        %1012 = vmatpush.bf16.msra.mxu0 0
        %1013 = vmatpush.bf16.msra.mxu0 0
        %1014 = vmatpush.bf16.msra.mxu0 0
        %1015 = vmatpush.bf16.msra.mxu0 0
        %1016 = vmatpush.bf16.msra.mxu0 0
        %1017 = vmatpush.bf16.msra.mxu0 0
        %1018 = vmatpush.bf16.msra.mxu0 %v1009
        %1019 = vmatmul.bf16.gmra.mxu0 %v709
        %v1020 = vpop.f32.mrf.mxu0
        %v1021 = vadd.f32 0.0, %v1020
        %v1022 = vpop.f32.mrf.mxu0
        %v1023 = vadd.f32 0.0, %v1022
        %1024 = vdwg.mxu0
        %v1027 = vunpack.c.l.b16 %v687
        %v1028 = vunpack.c.l.b16 %v688
        %v1029 = vpack.c.b16 %v1028, %v1027
        %1031 = vmatpush.bf16.msra.mxu0 0
        %1032 = vmatpush.bf16.msra.mxu0 0
        %1033 = vmatpush.bf16.msra.mxu0 0
        %1034 = vmatpush.bf16.msra.mxu0 0
        %1035 = vmatpush.bf16.msra.mxu0 0
        %1036 = vmatpush.bf16.msra.mxu0 0
        %1037 = vmatpush.bf16.msra.mxu0 0
        %1038 = vmatpush.bf16.msra.mxu0 %v1029
        %1039 = vmatmul.bf16.gmra.mxu0 %v709
        %v1040 = vpop.f32.mrf.mxu0
        %v1041 = vadd.f32 0.0, %v1040
        %v1042 = vpop.f32.mrf.mxu0
        %v1043 = vadd.f32 0.0, %v1042
        %1044 = vdwg.mxu0
        %v1047 = vunpack.c.l.b16 %v689
        %v1048 = vunpack.c.l.b16 %v690
        %v1049 = vpack.c.b16 %v1048, %v1047
        %1051 = vmatpush.bf16.msra.mxu0 0
        %1052 = vmatpush.bf16.msra.mxu0 0
        %1053 = vmatpush.bf16.msra.mxu0 0
        %1054 = vmatpush.bf16.msra.mxu0 0
        %1055 = vmatpush.bf16.msra.mxu0 0
        %1056 = vmatpush.bf16.msra.mxu0 0
        %1057 = vmatpush.bf16.msra.mxu0 0
        %1058 = vmatpush.bf16.msra.mxu0 %v1049
        %1059 = vmatmul.bf16.gmra.mxu0 %v709
        %v1060 = vpop.f32.mrf.mxu0
        %v1061 = vadd.f32 0.0, %v1060
        %v1062 = vpop.f32.mrf.mxu0
        %v1063 = vadd.f32 0.0, %v1062
        %1064 = vdwg.mxu0
        %v1067 = vunpack.c.l.b16 %v691
        %v1068 = vunpack.c.l.b16 %v692
        %v1069 = vpack.c.b16 %v1068, %v1067
        %1071 = vmatpush.bf16.msra.mxu0 0
        %1072 = vmatpush.bf16.msra.mxu0 0
        %1073 = vmatpush.bf16.msra.mxu0 0
        %1074 = vmatpush.bf16.msra.mxu0 0
        %1075 = vmatpush.bf16.msra.mxu0 0
        %1076 = vmatpush.bf16.msra.mxu0 0
        %1077 = vmatpush.bf16.msra.mxu0 0
        %1078 = vmatpush.bf16.msra.mxu0 %v1069
        %1079 = vmatmul.bf16.gmra.mxu0 %v709
        %v1080 = vpop.f32.mrf.mxu0
        %v1081 = vadd.f32 0.0, %v1080
        %v1082 = vpop.f32.mrf.mxu0
        %v1083 = vadd.f32 0.0, %v1082
        %1084 = vdwg.mxu0
        %v1087 = vunpack.c.l.b16 %v693
        %v1088 = vunpack.c.l.b16 %v694
        %v1089 = vpack.c.b16 %v1088, %v1087
        %1091 = vmatpush.bf16.msra.mxu0 0
        %1092 = vmatpush.bf16.msra.mxu0 0
        %1093 = vmatpush.bf16.msra.mxu0 0
        %1094 = vmatpush.bf16.msra.mxu0 0
        %1095 = vmatpush.bf16.msra.mxu0 0
        %1096 = vmatpush.bf16.msra.mxu0 0
        %1097 = vmatpush.bf16.msra.mxu0 0
        %1098 = vmatpush.bf16.msra.mxu0 %v1089
        %1099 = vmatmul.bf16.gmra.mxu0 %v709
        %v1100 = vpop.f32.mrf.mxu0
        %v1101 = vadd.f32 0.0, %v1100
        %v1102 = vpop.f32.mrf.mxu0
        %v1103 = vadd.f32 0.0, %v1102
        %1104 = vdwg.mxu0
        %v1105 = vmul.f32 %v721, %v721
        %v1106 = vmul.f32 %v723, %v723
        %v1107 = vmul.f32 %v741, %v741
        %v1108 = vmul.f32 %v743, %v743
        %v1109 = vmul.f32 %v761, %v761
        %v1110 = vmul.f32 %v763, %v763
        %v1111 = vmul.f32 %v781, %v781
        %v1112 = vmul.f32 %v783, %v783
        %v1113 = vmul.f32 %v801, %v801
        %v1114 = vmul.f32 %v803, %v803
        %v1115 = vmul.f32 %v821, %v821
        %v1116 = vmul.f32 %v823, %v823
        %v1117 = vmul.f32 %v841, %v841
        %v1118 = vmul.f32 %v843, %v843
        %v1119 = vmul.f32 %v861, %v861
        %v1120 = vmul.f32 %v863, %v863
        %v1121 = vmul.f32 %v721, %v801
        %v1122 = vmul.f32 %v723, %v803
        %v1123 = vmul.f32 %v741, %v821
        %v1124 = vmul.f32 %v743, %v823
        %v1125 = vmul.f32 %v761, %v841
        %v1126 = vmul.f32 %v763, %v843
        %v1127 = vmul.f32 %v781, %v861
        %v1128 = vmul.f32 %v783, %v863
        %v1129 = vsub.f32 %v881, %v1105
        %v1130 = vsub.f32 %v883, %v1106
        %v1131 = vsub.f32 %v901, %v1107
        %v1132 = vsub.f32 %v903, %v1108
        %v1133 = vsub.f32 %v921, %v1109
        %v1134 = vsub.f32 %v923, %v1110
        %v1135 = vsub.f32 %v941, %v1111
        %v1136 = vsub.f32 %v943, %v1112
        %v1137 = vsub.f32 %v961, %v1113
        %v1138 = vsub.f32 %v963, %v1114
        %v1139 = vsub.f32 %v981, %v1115
        %v1140 = vsub.f32 %v983, %v1116
        %v1141 = vsub.f32 %v1001, %v1117
        %v1142 = vsub.f32 %v1003, %v1118
        %v1143 = vsub.f32 %v1021, %v1119
        %v1144 = vsub.f32 %v1023, %v1120
        %v1145 = vsub.f32 %v1041, %v1121
        %v1146 = vsub.f32 %v1043, %v1122
        %v1147 = vsub.f32 %v1061, %v1123
        %v1148 = vsub.f32 %v1063, %v1124
        %v1149 = vsub.f32 %v1081, %v1125
        %v1150 = vsub.f32 %v1083, %v1126
        %v1151 = vsub.f32 %v1101, %v1127
        %v1152 = vsub.f32 %v1103, %v1128
        %v1153 = vmul.f32 %v1121, 2.0
        %v1154 = vmul.f32 %v1122, 2.0
        %v1155 = vmul.f32 %v1123, 2.0
        %v1156 = vmul.f32 %v1124, 2.0
        %v1157 = vmul.f32 %v1125, 2.0
        %v1158 = vmul.f32 %v1126, 2.0
        %v1159 = vmul.f32 %v1127, 2.0
        %v1160 = vmul.f32 %v1128, 2.0
        %v1161 = vadd.f32 %v1153, 0.0001
        %v1162 = vadd.f32 %v1154, 0.0001
        %v1163 = vadd.f32 %v1155, 0.0001
        %v1164 = vadd.f32 %v1156, 0.0001
        %v1165 = vadd.f32 %v1157, 0.0001
        %v1166 = vadd.f32 %v1158, 0.0001
        %v1167 = vadd.f32 %v1159, 0.0001
        %v1168 = vadd.f32 %v1160, 0.0001
        %v1169 = vmul.f32 %v1145, 2.0
        %v1170 = vmul.f32 %v1146, 2.0
        %v1171 = vmul.f32 %v1147, 2.0
        %v1172 = vmul.f32 %v1148, 2.0
        %v1173 = vmul.f32 %v1149, 2.0
        %v1174 = vmul.f32 %v1150, 2.0
        %v1175 = vmul.f32 %v1151, 2.0
        %v1176 = vmul.f32 %v1152, 2.0
        %v1177 = vadd.f32 %v1169, 0.0009
        %v1178 = vadd.f32 %v1170, 0.0009
        %v1179 = vadd.f32 %v1171, 0.0009
        %v1180 = vadd.f32 %v1172, 0.0009
        %v1181 = vadd.f32 %v1173, 0.0009
        %v1182 = vadd.f32 %v1174, 0.0009
        %v1183 = vadd.f32 %v1175, 0.0009
        %v1184 = vadd.f32 %v1176, 0.0009
        %v1185 = vmul.f32 %v1161, %v1177
        %v1186 = vmul.f32 %v1162, %v1178
        %v1187 = vmul.f32 %v1163, %v1179
        %v1188 = vmul.f32 %v1164, %v1180
        %v1189 = vmul.f32 %v1165, %v1181
        %v1190 = vmul.f32 %v1166, %v1182
        %v1191 = vmul.f32 %v1167, %v1183
        %v1192 = vmul.f32 %v1168, %v1184
        %v1193 = vadd.f32 %v1105, %v1113
        %v1194 = vadd.f32 %v1106, %v1114
        %v1195 = vadd.f32 %v1107, %v1115
        %v1196 = vadd.f32 %v1108, %v1116
        %v1197 = vadd.f32 %v1109, %v1117
        %v1198 = vadd.f32 %v1110, %v1118
        %v1199 = vadd.f32 %v1111, %v1119
        %v1200 = vadd.f32 %v1112, %v1120
        %v1201 = vadd.f32 %v1193, 0.0001
        %v1202 = vadd.f32 %v1194, 0.0001
        %v1203 = vadd.f32 %v1195, 0.0001
        %v1204 = vadd.f32 %v1196, 0.0001
        %v1205 = vadd.f32 %v1197, 0.0001
        %v1206 = vadd.f32 %v1198, 0.0001
        %v1207 = vadd.f32 %v1199, 0.0001
        %v1208 = vadd.f32 %v1200, 0.0001
        %v1209 = vadd.f32 %v1129, %v1137
        %v1210 = vadd.f32 %v1130, %v1138
        %v1211 = vadd.f32 %v1131, %v1139
        %v1212 = vadd.f32 %v1132, %v1140
        %v1213 = vadd.f32 %v1133, %v1141
        %v1214 = vadd.f32 %v1134, %v1142
        %v1215 = vadd.f32 %v1135, %v1143
        %v1216 = vadd.f32 %v1136, %v1144
        %v1217 = vadd.f32 %v1209, 0.0009
        %v1218 = vadd.f32 %v1210, 0.0009
        %v1219 = vadd.f32 %v1211, 0.0009
        %v1220 = vadd.f32 %v1212, 0.0009
        %v1221 = vadd.f32 %v1213, 0.0009
        %v1222 = vadd.f32 %v1214, 0.0009
        %v1223 = vadd.f32 %v1215, 0.0009
        %v1224 = vadd.f32 %v1216, 0.0009
        %v1225 = vmul.f32 %v1201, %v1217
        %v1226 = vmul.f32 %v1202, %v1218
        %v1227 = vmul.f32 %v1203, %v1219
        %v1228 = vmul.f32 %v1204, %v1220
        %v1229 = vmul.f32 %v1205, %v1221
        %v1230 = vmul.f32 %v1206, %v1222
        %v1231 = vmul.f32 %v1207, %v1223
        %v1232 = vmul.f32 %v1208, %v1224
        %v1233 = vrcp.pop %v1225
        %v1234 = vrcp.pop %v1226
        %v1235 = vrcp.pop %v1227
        %v1236 = vrcp.pop %v1228
        %v1237 = vrcp.pop %v1229
        %v1238 = vrcp.pop %v1230
        %v1239 = vrcp.pop %v1231
        %v1240 = vrcp.pop %v1232
        %v1241 = vmul.f32 %v1225, %v1233
        %v1242 = vmul.f32 %v1226, %v1234
        %v1243 = vmul.f32 %v1227, %v1235
        %v1244 = vmul.f32 %v1228, %v1236
        %v1245 = vmul.f32 %v1229, %v1237
        %v1246 = vmul.f32 %v1230, %v1238
        %v1247 = vmul.f32 %v1231, %v1239
        %v1248 = vmul.f32 %v1232, %v1240
        %v1249 = vsub.f32 2.0, %v1241
        %v1250 = vsub.f32 2.0, %v1242
        %v1251 = vsub.f32 2.0, %v1243
        %v1252 = vsub.f32 2.0, %v1244
        %v1253 = vsub.f32 2.0, %v1245
        %v1254 = vsub.f32 2.0, %v1246
        %v1255 = vsub.f32 2.0, %v1247
        %v1256 = vsub.f32 2.0, %v1248
        %v1257 = vmul.f32 %v1233, %v1249
        %v1258 = vmul.f32 %v1234, %v1250
        %v1259 = vmul.f32 %v1235, %v1251
        %v1260 = vmul.f32 %v1236, %v1252
        %v1261 = vmul.f32 %v1237, %v1253
        %v1262 = vmul.f32 %v1238, %v1254
        %v1263 = vmul.f32 %v1239, %v1255
        %v1264 = vmul.f32 %v1240, %v1256
        %v1265 = vmul.f32 %v1185, %v1257
        %v1266 = vmul.f32 %v1186, %v1258
        %v1267 = vmul.f32 %v1187, %v1259
        %v1268 = vmul.f32 %v1188, %v1260
        %v1269 = vmul.f32 %v1189, %v1261
        %v1270 = vmul.f32 %v1190, %v1262
        %v1271 = vmul.f32 %v1191, %v1263
        %v1272 = vmul.f32 %v1192, %v1264
        %v1273 = vsel %vm485, %v1265, 0.0
        %v1274 = vsel %vm485, %v1266, 0.0
        %v1275 = vadd.f32 %v1273, %v1274
        %v1276 = vsel %vm485, %v1267, 0.0
        %v1277 = vadd.f32 %v1275, %v1276
        %v1278 = vsel %vm485, %v1268, 0.0
        %v1279 = vadd.f32 %v1277, %v1278
        %v1280 = vsel %vm485, %v1269, 0.0
        %v1281 = vadd.f32 %v1279, %v1280
        %v1282 = vsel %vm485, %v1270, 0.0
        %v1283 = vadd.f32 %v1281, %v1282
        %v1284 = vsel %vm485, %v1271, 0.0
        %v1285 = vadd.f32 %v1283, %v1284
        %v1286 = vsel %vm485, %v1272, 0.0
        %v1287 = vadd.f32 %v1285, %v1286
        %v1288 = vrot.slane %v1287, 4
        %v1289 = vadd.f32 %v1287, %v1288
        %v1290 = vrot.slane %v1289, 2
        %v1291 = vadd.f32 %v1289, %v1290
        %v1292 = vrot.slane %v1291, 1
        %v1293 = vadd.f32 %v1291, %v1292
        %vm1294 = vcmask 122880
        %1295 = vst.msk [vmem:[%s293] sm:$0x1] %vm1294, %v1293
        %s1296 = sand.u32 %s127, 1
        %s1297 = scalar_lea.sflag [#allocation4], %s1296
        %s1298 = sand.u32 %s127, 1
        %s1299 = scalar_lea.vmem [#allocation10], %s1298
        // Predicated region
        $region53: #{tpu_custom_call.1} parent=35 // pred_check
          %p1300 = pneg %p137
        $region54: #{tpu_custom_call.1} parent=35 // pred_check_branch
          %1302 = sbr.rel (%p1300) target = $region56
        $region55: #{tpu_custom_call.1} parent=35 // pred_region
          %1304 = vsyncadd %s1297, 0
          %s1305 = scalar_lea.hbm %s4, %s25
          %s1307 = sshll.u32 %s1299, 4
          %s1308 = int_to_ptr.vmem [resolvable:$true] %s1307
          %s1309 = sshll.u32 %s1305, 4
          %s1310 = int_to_ptr.hbm [resolvable:$true] %s1309
          %1312 = dma.vmem_to_hbm [thread:$0]  %s1308, 16, %s1310, %s1297
        $region56: #{tpu_custom_call.1} parent=35 // pred_fallthru
          _
      $region36: #{tpu_custom_call.1} parent=5 // pred_fallthru
        _
      %p1313 = scmp.le.s32.totalorder 2, %s20
      // Predicated region
      $region57: #{tpu_custom_call.1} parent=5 // pred_check
        %p1314 = pneg %p1313
      $region58: #{tpu_custom_call.1} parent=5 // pred_check_branch
        %1316 = sbr.rel (%p1314) target = $region60
      $region59: #{tpu_custom_call.1} parent=5 // pred_region
        %s1317 = ssub.s32 %s20, 2
        // Predicated region
        $region61: #{tpu_custom_call.1} parent=59 // pred_check
          %p1318 = pneg %p143
        $region62: #{tpu_custom_call.1} parent=59 // pred_check_branch
          %1320 = sbr.rel (%p1318) target = $region64
        $region63: #{tpu_custom_call.1} parent=59 // pred_region
          %s1321 = sand.u32 %s128, 1
          %s1322 = scalar_lea.sflag [#allocation4], %s1321
          %s1323 = sand.u32 %s128, 1
          %s1324 = scalar_lea.vmem [#allocation10], %s1323
          %1326 = dma.done %s1322, 16
        $region64: #{tpu_custom_call.1} parent=59 // pred_fallthru
          _
      $region60: #{tpu_custom_call.1} parent=5 // pred_fallthru
        _
    $region6: #{tpu_custom_call.1} parent=1 // loop_footer
      %s24 = sadd.s32 1, %s20
    $region7: #{tpu_custom_call.1} parent=1 // loop_footer_branch
      %19 = sbr.rel target = $region3
    $region8: #{tpu_custom_call.1} parent=1 // loop_exit
      _
    %1327 = vsyncpa [#allocation3], 1
    %s1328 = scalar_lea.sflag [#allocation3], 1
    %1329 = vsyncpa %s1328, 1
    %1330 = vsyncpa [#allocation6], 1
    %s1331 = scalar_lea.sflag [#allocation6], 1
    %1332 = vsyncpa %s1331, 1
    %1333 = vsyncpa [#allocation9], 1
    %1334 = vsyncpa [#allocation4], 1
    %s1335 = scalar_lea.sflag [#allocation4], 1
    %1336 = vsyncpa %s1335, 1

</llo_original>
